<compile_context>
chip_gen: v5e
topology: v5e:2x2
jax: 0.10.0
libtpu: 0.0.40
codegen_flags: <defaults>
</compile_context>

<pallas_src>
import jax
import jax.numpy as jnp
from jax import lax
from jax.experimental import pallas as pl
from jax.experimental.pallas import tpu as pltpu


def _round_up(x, m):
    return ((x + m - 1) // m) * m


def _linear_kernel(x_ref, w_ref, b_ref, o_ref, acc_ref):
    """One (batch-tile, K-tile) step of  y = x @ W^T + b.

    x_ref:   [bm, tk]      input tile (f32)
    w_ref:   [O_pad, tk]   weight tile, PyTorch layout [out, in] (f32)
    b_ref:   [1, O_pad]    bias (f32)
    o_ref:   [bm, O_pad]   output tile (f32), written on last K step
    acc_ref: [bm, O_pad]   f32 VMEM accumulator, resident across K axis
    """
    k = pl.program_id(1)

    @pl.when(k == 0)
    def _():
        acc_ref[...] = jnp.zeros_like(acc_ref)

    # bf16 MXU inputs, f32 accumulation.  Contract D (axis 1 of both) so no
    # wrapper-side weight transpose is needed.
    x = x_ref[...].astype(jnp.bfloat16)
    w = w_ref[...].astype(jnp.bfloat16)
    acc_ref[...] += lax.dot_general(
        x, w,
        dimension_numbers=(((1,), (1,)), ((), ())),
        preferred_element_type=jnp.float32,
    )

    @pl.when(k == pl.num_programs(1) - 1)
    def _():
        o_ref[...] = (acc_ref[...] + b_ref[...]).astype(o_ref.dtype)


@jax.jit
def softmax_classifier_forward(x_nchw, weight, bias):
    """Forward pass of SoftmaxClassifier.

    Args:
      x_nchw: [B, C, H, W] float32 input (NCHW, matching PyTorch).
      weight: [output_dim, input_dim] float32 (PyTorch nn.Linear layout).
      bias:   [output_dim] float32.

    Returns:
      logits: [B, output_dim] float32.
    """
    B = x_nchw.shape[0]
    x_flat = x_nchw.reshape(B, -1)            # x.view(x.size(0), -1)
    D = x_flat.shape[1]
    O = weight.shape[0]

    # ---- padded / tiled sizes -------------------------------------------
    O_pad = _round_up(O, 128)                 # lane-dense output
    tk = min(512, _round_up(D, 128))          # K tile (reduction over D)
    D_pad = _round_up(D, tk)
    bm = min(_round_up(B, 8), 128)            # batch tile (sublane-aligned)
    B_pad = _round_up(B, bm)

    nb = B_pad // bm
    nk = D_pad // tk

    # Zero-pad: padded weight columns / bias entries are zero so padded
    # lanes contribute nothing; padded batch rows are sliced off below.
    x_p = jnp.pad(x_flat, ((0, B_pad - B), (0, D_pad - D)))
    w_p = jnp.pad(weight, ((0, O_pad - O), (0, D_pad - D)))   # [O_pad, D_pad]
    b_p = jnp.pad(bias, (0, O_pad - O)).reshape(1, O_pad)

    # ---- VMEM budget (sized so it also fits v7x's 64 MiB physical VMEM) --
    tile_bytes = 4 * (2 * bm * tk          # x double buffer
                      + 2 * O_pad * tk     # w double buffer
                      + 2 * bm * O_pad     # out double buffer
                      + 2 * O_pad          # bias double buffer
                      + bm * O_pad)        # accumulator scratch
    vmem_limit = int(min(64 * 1024 * 1024,
                         max(8 * 1024 * 1024, 2 * tile_bytes)))

    cost = pl.CostEstimate(
        flops=2 * B_pad * D_pad * O_pad,
        transcendentals=0,
        bytes_accessed=4 * (B_pad * D_pad + O_pad * D_pad
                            + O_pad + B_pad * O_pad),
    )

    out = pl.pallas_call(
        _linear_kernel,
        out_shape=jax.ShapeDtypeStruct((B_pad, O_pad), jnp.float32),
        grid_spec=pltpu.PrefetchScalarGridSpec(
            num_scalar_prefetch=0,
            grid=(nb, nk),
            in_specs=[
                pl.BlockSpec((bm, tk), lambda i, k: (i, k)),       # x
                pl.BlockSpec((O_pad, tk), lambda i, k: (0, k)),    # weight
                pl.BlockSpec((1, O_pad), lambda i, k: (0, 0)),     # bias
            ],
            out_specs=pl.BlockSpec((bm, O_pad), lambda i, k: (i, 0)),
            scratch_shapes=[pltpu.VMEM((bm, O_pad), jnp.float32)],
        ),
        compiler_params=pltpu.CompilerParams(
            dimension_semantics=("parallel", "arbitrary"),
            vmem_limit_bytes=vmem_limit,
        ),
        cost_estimate=cost,
    )(x_p, w_p, b_p)

    return out[:B, :O]


def init_params(key, input_dim, output_dim):
    # Deterministic init mimicking nn.Linear default: U(-1/sqrt(in), 1/sqrt(in))
    kw, kb = jax.random.split(key)
    bound = 1.0 / jnp.sqrt(jnp.float32(input_dim))
    weight = jax.random.uniform(
        kw, (output_dim, input_dim), jnp.float32, -bound, bound)
    bias = jax.random.uniform(
        kb, (output_dim,), jnp.float32, -bound, bound)
    return weight, bias


if __name__ == "__main__":
    key = jax.random.PRNGKey(0)
    k_x, k_p = jax.random.split(key)

    # Small shapes: batch=2, channels=4, spatial=16x16 -> input_dim = 1024
    B, C, H, W = 2, 4, 16, 16
    input_dim = C * H * W
    output_dim = 10

    x = jax.random.normal(k_x, (B, C, H, W), dtype=jnp.float32)
    weight, bias = init_params(k_p, input_dim, output_dim)

    logits = softmax_classifier_forward(x, weight, bias)
    logits = jax.block_until_ready(logits)

    # Correctness check against plain-JAX f32 reference of the PyTorch forward.
    # Tolerance is loose because the kernel uses bf16 MXU inputs (f32 accum).
    ref = x.reshape(B, -1) @ weight.T + bias
    assert logits.shape == (B, output_dim)
    assert jnp.allclose(logits, ref, atol=5e-2, rtol=2e-2), (
        float(jnp.max(jnp.abs(logits - ref))))

    print("KERNEL_OK")
</pallas_src>

<mosaic_0001>
module attributes {stable_mosaic.version = 11 : i64} {
  func.func @_linear_kernel(%arg0: i32, %arg1: i32, %arg2: memref<8x512xf32, #tpu.memory_space<vmem>>, %arg3: memref<128x512xf32, #tpu.memory_space<vmem>>, %arg4: memref<1x128xf32, #tpu.memory_space<vmem>>, %arg5: memref<8x128xf32, #tpu.memory_space<vmem>>, %arg6: memref<8x128xf32, #tpu.memory_space<vmem>>) attributes {dimension_semantics = [#tpu.dimension_semantics<parallel>, #tpu.dimension_semantics<arbitrary>], iteration_bounds = array<i64: 1, 2>, scalar_prefetch = 0 : i64, scratch_operands = 1 : i64, tpu.core_type = #tpu.core_type<tc>, window_params = [{transform_indices = @transform_0, window_bounds = array<i64: 8, 512>}, {transform_indices = @transform_1, window_bounds = array<i64: 128, 512>}, {pipeline_mode = #tpu.pipeline_mode<synchronous>, transform_indices = @transform_2, window_bounds = array<i64: 1, 128>}, {transform_indices = @transform_3, window_bounds = array<i64: 8, 128>}]} {
    %c0_i32 = arith.constant 0 : i32
    %0 = arith.cmpi eq, %arg1, %c0_i32 : i32
    %1 = arith.extui %0 : i1 to i32
    %c0_i32_0 = arith.constant 0 : i32
    %2 = arith.cmpi ne, %1, %c0_i32_0 : i32
    scf.if %2 {
      %cst_9 = arith.constant 0.000000e+00 : f32
      %14 = vector.broadcast %cst_9 : f32 to vector<8x128xf32>
      %c0_10 = arith.constant 0 : index
      %c0_11 = arith.constant 0 : index
      %15 = vector.load %arg6[%c0_10, %c0_11] : memref<8x128xf32, #tpu.memory_space<vmem>>, vector<8x128xf32>
      tpu.vector_store %arg6[%c0_10, %c0_11], %14 {strides = array<i32>} : memref<8x128xf32, #tpu.memory_space<vmem>>, vector<8x128xf32>,
    } else {
    }
    %c0 = arith.constant 0 : index
    %c0_1 = arith.constant 0 : index
    %3 = vector.load %arg2[%c0, %c0_1] : memref<8x512xf32, #tpu.memory_space<vmem>>, vector<8x512xf32>
    %4 = arith.truncf %3 : vector<8x512xf32> to vector<8x512xbf16>
    %c0_2 = arith.constant 0 : index
    %c0_3 = arith.constant 0 : index
    %5 = vector.load %arg3[%c0_2, %c0_3] : memref<128x512xf32, #tpu.memory_space<vmem>>, vector<128x512xf32>
    %6 = arith.truncf %5 : vector<128x512xf32> to vector<128x512xbf16>
    %c0_4 = arith.constant 0 : index
    %c0_5 = arith.constant 0 : index
    %7 = vector.load %arg6[%c0_4, %c0_5] : memref<8x128xf32, #tpu.memory_space<vmem>>, vector<8x128xf32>
    %cst = arith.constant dense<0.000000e+00> : vector<8x128xf32>
    %8 = tpu.matmul %4, %6, %cst {dimension_numbers = #tpu.dot_dimension_numbers<[1], [1], [0], [0], [0, 0, 1, 0], [], []>} : vector<8x512xbf16>, vector<128x512xbf16>, vector<8x128xf32> -> vector<8x128xf32>
    %9 = arith.addf %7, %8 : vector<8x128xf32>
    %c0_6 = arith.constant 0 : index
    %c0_7 = arith.constant 0 : index
    %10 = vector.load %arg6[%c0_6, %c0_7] : memref<8x128xf32, #tpu.memory_space<vmem>>, vector<8x128xf32>
    tpu.vector_store %arg6[%c0_6, %c0_7], %9 {strides = array<i32>} : memref<8x128xf32, #tpu.memory_space<vmem>>, vector<8x128xf32>,
    %c1_i32 = arith.constant 1 : i32
    %11 = arith.cmpi eq, %arg1, %c1_i32 : i32
    %12 = arith.extui %11 : i1 to i32
    %c0_i32_8 = arith.constant 0 : i32
    %13 = arith.cmpi ne, %12, %c0_i32_8 : i32
    scf.if %13 {
      %c0_9 = arith.constant 0 : index
      %c0_10 = arith.constant 0 : index
      %14 = vector.load %arg6[%c0_9, %c0_10] : memref<8x128xf32, #tpu.memory_space<vmem>>, vector<8x128xf32>
      %c0_11 = arith.constant 0 : index
      %c0_12 = arith.constant 0 : index
      %15 = vector.load %arg4[%c0_11, %c0_12] : memref<1x128xf32, #tpu.memory_space<vmem>>, vector<1x128xf32>
      %16 = vector.broadcast %15 : vector<1x128xf32> to vector<8x128xf32>
      %17 = arith.addf %14, %16 : vector<8x128xf32>
      %c0_13 = arith.constant 0 : index
      %c0_14 = arith.constant 0 : index
      %18 = vector.load %arg5[%c0_13, %c0_14] : memref<8x128xf32, #tpu.memory_space<vmem>>, vector<8x128xf32>
      tpu.vector_store %arg5[%c0_13, %c0_14], %17 {strides = array<i32>} : memref<8x128xf32, #tpu.memory_space<vmem>>, vector<8x128xf32>,
    } else {
    }
    return
  }
  func.func @transform_0(%arg0: i32, %arg1: i32) -> (i32, i32) {
    %c0_i32 = arith.constant 0 : i32
    return %arg0, %arg1 : i32, i32
  }
  func.func @transform_1(%arg0: i32, %arg1: i32) -> (i32, i32) {
    %c0_i32 = arith.constant 0 : i32
    %c0_i32_0 = arith.constant 0 : i32
    return %c0_i32, %arg1 : i32, i32
  }
  func.func @transform_2(%arg0: i32, %arg1: i32) -> (i32, i32) {
    %c0_i32 = arith.constant 0 : i32
    %c0_i32_0 = arith.constant 0 : i32
    %c0_i32_1 = arith.constant 0 : i32
    return %c0_i32, %c0_i32_0 : i32, i32
  }
  func.func @transform_3(%arg0: i32, %arg1: i32) -> (i32, i32) {
    %c0_i32 = arith.constant 0 : i32
    %c0_i32_0 = arith.constant 0 : i32
    return %arg0, %c0_i32 : i32, i32
  }
}

</mosaic_0001>

<llo_original>
// kernel: softmax_classifier_forward.1
$region0: #{softmax_classifier_forward.1}
  #allocation0 [shape = 'u32[]', space=smem, size = 0x4, offset = 0x4, fixed_abs, tag = 'smem constant byte address 0x4 - core index']
  #allocation1 [shape = 'u32[72,128]{1,0:T(1,128)}', space=vmem, size = 0x9000, scoped, tag = 'internal scratch']
  #allocation2 [shape = 'f32[8,128]{1,0:T(8,128)}', space=vmem, size = 0x1000, scoped, tag = 'scratch operand']
  %s0 = inlined_call_operand.vmem [shape: f32[8,1024], index: 0, kind: input, shape index: {}]
  %s1 = inlined_call_operand.vmem [shape: f32[128,1024], index: 1, kind: input, shape index: {}]
  %s2 = inlined_call_operand.vmem [shape: f32[1,128], index: 2, kind: input, shape index: {}]
  %s3 = inlined_call_operand.vmem [shape: f32[8,128], index: 3, kind: output, shape index: {}]
  %s4 = sld [smem:[#allocation0]]
  $region76: #{softmax_classifier_forward.1} parent=0
    _
  %s6 = ssub.s32 1, %s4
  %s7 = scalar_select 0, %s6, %s4
  $region1: #{softmax_classifier_forward.1} parent=0
    #allocation3 [shape = 'u8[524288]{0}', space=vmem, size = 0x80000, scoped, tag = 'input window, operand 1']
    loop: start=0, step=1, limit=4
    $region2: #{softmax_classifier_forward.1} parent=1 // loop_pre_header
      _
    $region3: #{softmax_classifier_forward.1} parent=1 // loop_header
      %s9 = sphi 0, %s13
      %p10 = scmp.ge.s32.totalorder %s9, 4
      %s16 = sphi 0, %s28
      %s17 = sphi 0, %s24
      %s18 = sphi 0, %s16
      %s19 = sphi 0, %s17
      %s20 = sphi 0, %s18
      %s21 = sphi 0, %s19
      %s33 = sphi 0, %s35
      %s36 = sphi 0, %s33
      %s37 = sphi 0, %s36
      %s53 = sphi 0, %s37
      %s59 = sphi 0, %s61
      %s62 = sphi 0, %s59
      %s63 = sphi 0, %s62
      %s79 = sphi 0, %s63
      %s83 = sphi 0, %s83
      %s85 = sphi 0, %s83
      %s86 = sphi 0, %s85
      %s100 = sphi 0, %s86
      %s106 = sphi 0, %s108
      %s109 = sphi 0, %s106
      %s110 = sphi 0, %s109
      %s126 = sphi 0, %s110
    $region4: #{softmax_classifier_forward.1} parent=1 // loop_header_branch
      %12 = sbr.rel (%p10) target = $region8
    $region5: #{softmax_classifier_forward.1} parent=1 // loop_body
      %s14 = ssub.s32 %s9, 1
      %s15 = ssub.s32 %s9, 2
      %s22 = sadd.s32 1, %s17
      %p23 = scmp.ge.s32.totalorder %s22, 2
      %s24 = scalar_select %p23, 0, %s22
      %s25 = sadd.s32 1, %s16
      %s26 = scalar_select %p23, %s25, %s16
      %p27 = scmp.ge.s32.totalorder %s26, 1
      %s28 = scalar_select %p27, 0, %s26
      %s29 = ssub.s32 %s16, %s28
      %s30 = ssub.s32 %s17, %s24
      %s31 = sor.u32 %s29, %s30
      %p32 = scmp.eq.s32.totalorder %s31, 0
      %s34 = sadd.s32 %s33, 1
      %s35 = scalar_select %p32, %s33, %s34
      %p38 = pneg %p32
      %p39 = scmp.eq.s32.totalorder %s9, 1
      %p40 = por %p38, %p39
      %p41 = scmp.ne.s32.totalorder %s33, %s36
      %p42 = scmp.eq.s32.totalorder %s9, 0
      %p43 = por %p41, %p42
      %p44 = scmp.ne.s32.totalorder %s33, %s36
      %p45 = scmp.eq.s32.totalorder %s14, 1
      %p46 = por %p44, %p45
      %p47 = scmp.ne.s32.totalorder %s36, %s37
      %p48 = scmp.eq.s32.totalorder %s14, 0
      %p49 = por %p47, %p48
      %p50 = scmp.ne.s32.totalorder %s36, %s37
      %p51 = scmp.eq.s32.totalorder %s15, 1
      %p52 = por %p50, %p51
      %p54 = scmp.ne.s32.totalorder %s37, %s53
      %p55 = scmp.eq.s32.totalorder %s15, 0
      %p56 = por %p54, %p55
      %s57 = ssub.s32 %s17, %s24
      %p58 = scmp.eq.s32.totalorder %s57, 0
      %s60 = sadd.s32 %s59, 1
      %s61 = scalar_select %p58, %s59, %s60
      %p64 = pneg %p58
      %p65 = scmp.eq.s32.totalorder %s9, 1
      %p66 = por %p64, %p65
      %p67 = scmp.ne.s32.totalorder %s59, %s62
      %p68 = scmp.eq.s32.totalorder %s9, 0
      %p69 = por %p67, %p68
      %p70 = scmp.ne.s32.totalorder %s59, %s62
      %p71 = scmp.eq.s32.totalorder %s14, 1
      %p72 = por %p70, %p71
      %p73 = scmp.ne.s32.totalorder %s62, %s63
      %p74 = scmp.eq.s32.totalorder %s14, 0
      %p75 = por %p73, %p74
      %p76 = scmp.ne.s32.totalorder %s62, %s63
      %p77 = scmp.eq.s32.totalorder %s15, 1
      %p78 = por %p76, %p77
      %p80 = scmp.ne.s32.totalorder %s63, %s79
      %p81 = scmp.eq.s32.totalorder %s15, 0
      %p82 = por %p80, %p81
      %s84 = sadd.s32 %s83, 1
      %p87 = scmp.eq.s32.totalorder %s9, 1
      %p88 = scmp.ne.s32.totalorder %s83, %s85
      %p89 = scmp.eq.s32.totalorder %s9, 0
      %p90 = por %p88, %p89
      %p91 = scmp.ne.s32.totalorder %s83, %s85
      %p92 = scmp.eq.s32.totalorder %s14, 1
      %p93 = por %p91, %p92
      %p94 = scmp.ne.s32.totalorder %s85, %s86
      %p95 = scmp.eq.s32.totalorder %s14, 0
      %p96 = por %p94, %p95
      %p97 = scmp.ne.s32.totalorder %s85, %s86
      %p98 = scmp.eq.s32.totalorder %s15, 1
      %p99 = por %p97, %p98
      %p101 = scmp.ne.s32.totalorder %s86, %s100
      %p102 = scmp.eq.s32.totalorder %s15, 0
      %p103 = por %p101, %p102
      %s104 = ssub.s32 %s16, %s28
      %p105 = scmp.eq.s32.totalorder %s104, 0
      %s107 = sadd.s32 %s106, 1
      %s108 = scalar_select %p105, %s106, %s107
      %p111 = pneg %p105
      %p112 = scmp.eq.s32.totalorder %s9, 1
      %p113 = por %p111, %p112
      %p114 = scmp.ne.s32.totalorder %s106, %s109
      %p115 = scmp.eq.s32.totalorder %s9, 0
      %p116 = por %p114, %p115
      %p117 = scmp.ne.s32.totalorder %s106, %s109
      %p118 = scmp.eq.s32.totalorder %s14, 1
      %p119 = por %p117, %p118
      %p120 = scmp.ne.s32.totalorder %s109, %s110
      %p121 = scmp.eq.s32.totalorder %s14, 0
      %p122 = por %p120, %p121
      %p123 = scmp.ne.s32.totalorder %s109, %s110
      %p124 = scmp.eq.s32.totalorder %s15, 1
      %p125 = por %p123, %p124
      %p127 = scmp.ne.s32.totalorder %s110, %s126
      %p128 = scmp.eq.s32.totalorder %s15, 0
      %p129 = por %p127, %p128
      %p130 = scmp.le.s32.totalorder 1, %s9
      %p131 = scmp.lt.s32.totalorder %s9, 3
      %p132 = pnand %p130, %p131
      %p133 = pneg %p132
      // Predicated region
      $region9: #{softmax_classifier_forward.1} parent=5 // pred_check
        _
      $region10: #{softmax_classifier_forward.1} parent=5 // pred_check_branch
        %135 = sbr.rel (%p132) target = $region12
      $region11: #{softmax_classifier_forward.1} parent=5 // pred_region
        %s136 = ssub.s32 %s9, 1
        // Predicated region
        $region13: #{softmax_classifier_forward.1} parent=11 // pred_check
          %p137 = pneg %p96
        $region14: #{softmax_classifier_forward.1} parent=11 // pred_check_branch
          %139 = sbr.rel (%p137) target = $region16
        $region15: #{softmax_classifier_forward.1} parent=11 // pred_region
          _
        $region16: #{softmax_classifier_forward.1} parent=11 // pred_fallthru
          _
      $region12: #{softmax_classifier_forward.1} parent=5 // pred_fallthru
        _
      %p140 = scmp.lt.s32.totalorder %s9, 2
      // Predicated region
      $region17: #{softmax_classifier_forward.1} parent=5 // pred_check
        %p141 = pneg %p140
      $region18: #{softmax_classifier_forward.1} parent=5 // pred_check_branch
        %143 = sbr.rel (%p141) target = $region20
      $region19: #{softmax_classifier_forward.1} parent=5 // pred_region
        // Predicated region
        $region21: #{softmax_classifier_forward.1} parent=19 // pred_check
          %p144 = pneg %p43
        $region22: #{softmax_classifier_forward.1} parent=19 // pred_check_branch
          %146 = sbr.rel (%p144) target = $region24
        $region23: #{softmax_classifier_forward.1} parent=19 // pred_region
          %s147 = smul.u32 4, %s17
          %p148 = scmp.lt.s32.totalorder %s16, 0
          %s149 = scalar_select %p148, %s16, 0
          %p150 = scmp.lt.s32.totalorder %s147, 7
          %s151 = scalar_select %p150, %s147, 7
          %s152 = smul.addr %s149, 8
          %s153 = sadd.s32 %s151, %s152
          %s154 = smul.addr %s153, 8
          %s155 = scalar_lea.vmem %s0, %s154
          %s156 = smul.u32 4, %s17
        $region24: #{softmax_classifier_forward.1} parent=19 // pred_fallthru
          _
        // Predicated region
        $region25: #{softmax_classifier_forward.1} parent=19 // pred_check
          %p157 = pneg %p69
        $region26: #{softmax_classifier_forward.1} parent=19 // pred_check_branch
          %159 = sbr.rel (%p157) target = $region28
        $region27: #{softmax_classifier_forward.1} parent=19 // pred_region
          %s160 = sand.u32 %s59, 1
          %s161 = sand.u32 %s59, 1
          %s162 = smul.addr %s161, 512
          %s163 = scalar_lea.vmem [#allocation3], %s162
          %s164 = smul.u32 4, %s17
          %s165 = smul.addr %s164, 8
          %s166 = scalar_lea.vmem %s1, %s165
          // Predicated region
          $region29: #{softmax_classifier_forward.1} parent=27 // pred_check
            _
          $region30: #{softmax_classifier_forward.1} parent=27 // pred_check_branch
            %168 = sbr.rel (0) target = $region32
          $region31: #{softmax_classifier_forward.1} parent=27 // pred_region
            // Predicated region
            $region33: #{softmax_classifier_forward.1} parent=31 // pred_check
              _
            $region34: #{softmax_classifier_forward.1} parent=31 // pred_check_branch
              %170 = sbr.rel (0) target = $region36
            $region35: #{softmax_classifier_forward.1} parent=31 // pred_region
              loop: start=0, step=1, limit=1
              $region37: #{softmax_classifier_forward.1} parent=35 // loop_pre_header
                _
              $region38: #{softmax_classifier_forward.1} parent=35 // loop_header
                %s172 = sphi 0, %s176
                %p173 = scmp.ge.s32.totalorder %s172, 1
                %s177 = sphi %s166, %s166
                %s178 = sphi %s163, %s163
              $region39: #{softmax_classifier_forward.1} parent=35 // loop_header_branch
                %175 = sbr.rel (%p173) target = $region43
              $region40: #{softmax_classifier_forward.1} parent=35 // loop_body
                %v179 = vld [vmem:[%s177] sm:$0xff]
                %180 = vst [vmem:[%s178] sm:$0xff] %v179
                %v181 = vld [vmem:[%s177 + $0x8] sm:$0xff]
                %182 = vst [vmem:[%s178 + $0x8] sm:$0xff] %v181
                %v183 = vld [vmem:[%s177 + $0x10] sm:$0xff]
                %184 = vst [vmem:[%s178 + $0x10] sm:$0xff] %v183
                %v185 = vld [vmem:[%s177 + $0x18] sm:$0xff]
                %186 = vst [vmem:[%s178 + $0x18] sm:$0xff] %v185
                %v187 = vld [vmem:[%s177 + $0x40] sm:$0xff]
                %188 = vst [vmem:[%s178 + $0x20] sm:$0xff] %v187
                %v189 = vld [vmem:[%s177 + $0x48] sm:$0xff]
                %190 = vst [vmem:[%s178 + $0x28] sm:$0xff] %v189
                %v191 = vld [vmem:[%s177 + $0x50] sm:$0xff]
                %192 = vst [vmem:[%s178 + $0x30] sm:$0xff] %v191
                %v193 = vld [vmem:[%s177 + $0x58] sm:$0xff]
                %194 = vst [vmem:[%s178 + $0x38] sm:$0xff] %v193
                %v195 = vld [vmem:[%s177 + $0x80] sm:$0xff]
                %196 = vst [vmem:[%s178 + $0x40] sm:$0xff] %v195
                %v197 = vld [vmem:[%s177 + $0x88] sm:$0xff]
                %198 = vst [vmem:[%s178 + $0x48] sm:$0xff] %v197
                %v199 = vld [vmem:[%s177 + $0x90] sm:$0xff]
                %200 = vst [vmem:[%s178 + $0x50] sm:$0xff] %v199
                %v201 = vld [vmem:[%s177 + $0x98] sm:$0xff]
                %202 = vst [vmem:[%s178 + $0x58] sm:$0xff] %v201
                %v203 = vld [vmem:[%s177 + $0xc0] sm:$0xff]
                %204 = vst [vmem:[%s178 + $0x60] sm:$0xff] %v203
                %v205 = vld [vmem:[%s177 + $0xc8] sm:$0xff]
                %206 = vst [vmem:[%s178 + $0x68] sm:$0xff] %v205
                %v207 = vld [vmem:[%s177 + $0xd0] sm:$0xff]
                %208 = vst [vmem:[%s178 + $0x70] sm:$0xff] %v207
                %v209 = vld [vmem:[%s177 + $0xd8] sm:$0xff]
                %210 = vst [vmem:[%s178 + $0x78] sm:$0xff] %v209
                %v211 = vld [vmem:[%s177 + $0x100] sm:$0xff]
                %212 = vst [vmem:[%s178 + $0x80] sm:$0xff] %v211
                %v213 = vld [vmem:[%s177 + $0x108] sm:$0xff]
                %214 = vst [vmem:[%s178 + $0x88] sm:$0xff] %v213
                %v215 = vld [vmem:[%s177 + $0x110] sm:$0xff]
                %216 = vst [vmem:[%s178 + $0x90] sm:$0xff] %v215
                %v217 = vld [vmem:[%s177 + $0x118] sm:$0xff]
                %218 = vst [vmem:[%s178 + $0x98] sm:$0xff] %v217
                %v219 = vld [vmem:[%s177 + $0x140] sm:$0xff]
                %220 = vst [vmem:[%s178 + $0xa0] sm:$0xff] %v219
                %v221 = vld [vmem:[%s177 + $0x148] sm:$0xff]
                %222 = vst [vmem:[%s178 + $0xa8] sm:$0xff] %v221
                %v223 = vld [vmem:[%s177 + $0x150] sm:$0xff]
                %224 = vst [vmem:[%s178 + $0xb0] sm:$0xff] %v223
                %v225 = vld [vmem:[%s177 + $0x158] sm:$0xff]
                %226 = vst [vmem:[%s178 + $0xb8] sm:$0xff] %v225
                %v227 = vld [vmem:[%s177 + $0x180] sm:$0xff]
                %228 = vst [vmem:[%s178 + $0xc0] sm:$0xff] %v227
                %v229 = vld [vmem:[%s177 + $0x188] sm:$0xff]
                %230 = vst [vmem:[%s178 + $0xc8] sm:$0xff] %v229
                %v231 = vld [vmem:[%s177 + $0x190] sm:$0xff]
                %232 = vst [vmem:[%s178 + $0xd0] sm:$0xff] %v231
                %v233 = vld [vmem:[%s177 + $0x198] sm:$0xff]
                %234 = vst [vmem:[%s178 + $0xd8] sm:$0xff] %v233
                %v235 = vld [vmem:[%s177 + $0x1c0] sm:$0xff]
                %236 = vst [vmem:[%s178 + $0xe0] sm:$0xff] %v235
                %v237 = vld [vmem:[%s177 + $0x1c8] sm:$0xff]
                %238 = vst [vmem:[%s178 + $0xe8] sm:$0xff] %v237
                %v239 = vld [vmem:[%s177 + $0x1d0] sm:$0xff]
                %240 = vst [vmem:[%s178 + $0xf0] sm:$0xff] %v239
                %v241 = vld [vmem:[%s177 + $0x1d8] sm:$0xff]
                %242 = vst [vmem:[%s178 + $0xf8] sm:$0xff] %v241
                %v243 = vld [vmem:[%s177 + $0x200] sm:$0xff]
                %244 = vst [vmem:[%s178 + $0x100] sm:$0xff] %v243
                %v245 = vld [vmem:[%s177 + $0x208] sm:$0xff]
                %246 = vst [vmem:[%s178 + $0x108] sm:$0xff] %v245
                %v247 = vld [vmem:[%s177 + $0x210] sm:$0xff]
                %248 = vst [vmem:[%s178 + $0x110] sm:$0xff] %v247
                %v249 = vld [vmem:[%s177 + $0x218] sm:$0xff]
                %250 = vst [vmem:[%s178 + $0x118] sm:$0xff] %v249
                %v251 = vld [vmem:[%s177 + $0x240] sm:$0xff]
                %252 = vst [vmem:[%s178 + $0x120] sm:$0xff] %v251
                %v253 = vld [vmem:[%s177 + $0x248] sm:$0xff]
                %254 = vst [vmem:[%s178 + $0x128] sm:$0xff] %v253
                %v255 = vld [vmem:[%s177 + $0x250] sm:$0xff]
                %256 = vst [vmem:[%s178 + $0x130] sm:$0xff] %v255
                %v257 = vld [vmem:[%s177 + $0x258] sm:$0xff]
                %258 = vst [vmem:[%s178 + $0x138] sm:$0xff] %v257
                %v259 = vld [vmem:[%s177 + $0x280] sm:$0xff]
                %260 = vst [vmem:[%s178 + $0x140] sm:$0xff] %v259
                %v261 = vld [vmem:[%s177 + $0x288] sm:$0xff]
                %262 = vst [vmem:[%s178 + $0x148] sm:$0xff] %v261
                %v263 = vld [vmem:[%s177 + $0x290] sm:$0xff]
                %264 = vst [vmem:[%s178 + $0x150] sm:$0xff] %v263
                %v265 = vld [vmem:[%s177 + $0x298] sm:$0xff]
                %266 = vst [vmem:[%s178 + $0x158] sm:$0xff] %v265
                %v267 = vld [vmem:[%s177 + $0x2c0] sm:$0xff]
                %268 = vst [vmem:[%s178 + $0x160] sm:$0xff] %v267
                %v269 = vld [vmem:[%s177 + $0x2c8] sm:$0xff]
                %270 = vst [vmem:[%s178 + $0x168] sm:$0xff] %v269
                %v271 = vld [vmem:[%s177 + $0x2d0] sm:$0xff]
                %272 = vst [vmem:[%s178 + $0x170] sm:$0xff] %v271
                %v273 = vld [vmem:[%s177 + $0x2d8] sm:$0xff]
                %274 = vst [vmem:[%s178 + $0x178] sm:$0xff] %v273
                %v275 = vld [vmem:[%s177 + $0x300] sm:$0xff]
                %276 = vst [vmem:[%s178 + $0x180] sm:$0xff] %v275
                %v277 = vld [vmem:[%s177 + $0x308] sm:$0xff]
                %278 = vst [vmem:[%s178 + $0x188] sm:$0xff] %v277
                %v279 = vld [vmem:[%s177 + $0x310] sm:$0xff]
                %280 = vst [vmem:[%s178 + $0x190] sm:$0xff] %v279
                %v281 = vld [vmem:[%s177 + $0x318] sm:$0xff]
                %282 = vst [vmem:[%s178 + $0x198] sm:$0xff] %v281
                %v283 = vld [vmem:[%s177 + $0x340] sm:$0xff]
                %284 = vst [vmem:[%s178 + $0x1a0] sm:$0xff] %v283
                %v285 = vld [vmem:[%s177 + $0x348] sm:$0xff]
                %286 = vst [vmem:[%s178 + $0x1a8] sm:$0xff] %v285
                %v287 = vld [vmem:[%s177 + $0x350] sm:$0xff]
                %288 = vst [vmem:[%s178 + $0x1b0] sm:$0xff] %v287
                %v289 = vld [vmem:[%s177 + $0x358] sm:$0xff]
                %290 = vst [vmem:[%s178 + $0x1b8] sm:$0xff] %v289
                %v291 = vld [vmem:[%s177 + $0x380] sm:$0xff]
                %292 = vst [vmem:[%s178 + $0x1c0] sm:$0xff] %v291
                %v293 = vld [vmem:[%s177 + $0x388] sm:$0xff]
                %294 = vst [vmem:[%s178 + $0x1c8] sm:$0xff] %v293
                %v295 = vld [vmem:[%s177 + $0x390] sm:$0xff]
                %296 = vst [vmem:[%s178 + $0x1d0] sm:$0xff] %v295
                %v297 = vld [vmem:[%s177 + $0x398] sm:$0xff]
                %298 = vst [vmem:[%s178 + $0x1d8] sm:$0xff] %v297
                %v299 = vld [vmem:[%s177 + $0x3c0] sm:$0xff]
                %300 = vst [vmem:[%s178 + $0x1e0] sm:$0xff] %v299
                %v301 = vld [vmem:[%s177 + $0x3c8] sm:$0xff]
                %302 = vst [vmem:[%s178 + $0x1e8] sm:$0xff] %v301
                %v303 = vld [vmem:[%s177 + $0x3d0] sm:$0xff]
                %304 = vst [vmem:[%s178 + $0x1f0] sm:$0xff] %v303
                %v305 = vld [vmem:[%s177 + $0x3d8] sm:$0xff]
                %306 = vst [vmem:[%s178 + $0x1f8] sm:$0xff] %v305
              $region41: #{softmax_classifier_forward.1} parent=35 // loop_footer
                %s176 = sadd.s32 1, %s172
              $region42: #{softmax_classifier_forward.1} parent=35 // loop_footer_branch
                %171 = sbr.rel target = $region38
              $region43: #{softmax_classifier_forward.1} parent=35 // loop_exit
                _
            $region36: #{softmax_classifier_forward.1} parent=31 // pred_fallthru
              _
            // Predicated region
            $region44: #{softmax_classifier_forward.1} parent=31 // pred_check
              _
            $region45: #{softmax_classifier_forward.1} parent=31 // pred_check_branch
              %308 = sbr.rel target = $region47
            $region46: #{softmax_classifier_forward.1} parent=31 // pred_region
              _
            $region47: #{softmax_classifier_forward.1} parent=31 // pred_fallthru
              _
          $region32: #{softmax_classifier_forward.1} parent=27 // pred_fallthru
            _
          %309 = vnop
        $region28: #{softmax_classifier_forward.1} parent=19 // pred_fallthru
          _
      $region20: #{softmax_classifier_forward.1} parent=5 // pred_fallthru
        _
      %p310 = scmp.le.s32.totalorder 1, %s9
      %p311 = scmp.lt.s32.totalorder %s9, 3
      %p312 = pnand %p310, %p311
      %p313 = pneg %p312
      // Predicated region
      $region48: #{softmax_classifier_forward.1} parent=5 // pred_check
        _
      $region49: #{softmax_classifier_forward.1} parent=5 // pred_check_branch
        %315 = sbr.rel (%p312) target = $region51
      $region50: #{softmax_classifier_forward.1} parent=5 // pred_region
        %s316 = ssub.s32 %s9, 1
        %s317 = sand.u32 %s62, 1
        %s318 = sand.u32 %s62, 1
        %s319 = smul.addr %s318, 512
        %s320 = scalar_lea.vmem [#allocation3], %s319
        // Predicated region
        $region52: #{softmax_classifier_forward.1} parent=50 // pred_check
          %p321 = pneg %p75
        $region53: #{softmax_classifier_forward.1} parent=50 // pred_check_branch
          %323 = sbr.rel (%p321) target = $region55
        $region54: #{softmax_classifier_forward.1} parent=50 // pred_region
          _
        $region55: #{softmax_classifier_forward.1} parent=50 // pred_fallthru
          _
        %s324 = smul.u32 4, %s19
        %p325 = scmp.lt.s32.totalorder %s18, 0
        %s326 = scalar_select %p325, %s18, 0
        %p327 = scmp.lt.s32.totalorder %s324, 7
        %s328 = scalar_select %p327, %s324, 7
        %s329 = smul.addr %s326, 8
        %s330 = sadd.s32 %s328, %s329
        %s331 = smul.addr %s330, 8
        %s332 = scalar_lea.vmem %s0, %s331
        %p333 = pneg %p49
        %p334 = pneg %p46
        %s335 = sand.u32 %s62, 1
        %s336 = sand.u32 %s62, 1
        %s337 = smul.addr %s336, 512
        %s338 = scalar_lea.vmem [#allocation3], %s337
        %p339 = pneg %p75
        %p340 = pneg %p72
        %p341 = pneg %p96
        %p342 = pneg %p93
        %p343 = pneg %p122
        %p344 = pneg %p119
        %p345 = scmp.lt.s32.totalorder %s18, 0
        %s346 = scalar_select %p345, %s18, 0
        %s347 = smul.addr %s346, 8
        %s348 = scalar_lea.vmem %s3, %s347
        %s349 = smul.u32 4, %s19
        %p350 = scmp.lt.s32.totalorder %s18, 0
        %s351 = scalar_select %p350, %s18, 0
        %p352 = scmp.lt.s32.totalorder %s349, 7
        %s353 = scalar_select %p352, %s349, 7
        %s354 = smul.addr %s351, 8
        %s355 = sadd.s32 %s353, %s354
        %s356 = smul.addr %s355, 8
        %s357 = scalar_lea.vmem %s0, %s356
        %s358 = smul.u32 4, %s19
        %s359 = smul.u32 4, %s19
        %p360 = scmp.lt.s32.totalorder %s18, 0
        %s361 = scalar_select %p360, %s18, 0
        %s362 = smul.addr %s361, 8
        %s363 = scalar_lea.vmem %s3, %s362
        %p364 = scmp.eq.s32.totalorder %s19, 0
        // Predicated region
        $region56: #{softmax_classifier_forward.1} parent=50 // pred_check
          %p365 = pneg %p364
        $region57: #{softmax_classifier_forward.1} parent=50 // pred_check_branch
          %367 = sbr.rel (%p365) target = $region59
        $region58: #{softmax_classifier_forward.1} parent=50 // pred_region
          %368 = vst [vmem:[#allocation2] sm:$0xff] 0.0
        $region59: #{softmax_classifier_forward.1} parent=50 // pred_fallthru
          _
        %v369 = vld [vmem:[%s357] sm:$0xff]
        %v370 = vld [vmem:[%s357 + $0x8] sm:$0xff]
        %v371 = vld [vmem:[%s357 + $0x10] sm:$0xff]
        %v372 = vld [vmem:[%s357 + $0x18] sm:$0xff]
        %v373 = vpack.c.bf16 %v369, %v369
        %v374 = vpack.c.bf16 %v370, %v370
        %v375 = vpack.c.bf16 %v371, %v371
        %v376 = vpack.c.bf16 %v372, %v372
        %v377 = vld [vmem:[%s320] sm:$0xff]
        %v378 = vld [vmem:[%s320 + $0x8] sm:$0xff]
        %v379 = vld [vmem:[%s320 + $0x10] sm:$0xff]
        %v380 = vld [vmem:[%s320 + $0x18] sm:$0xff]
        %v381 = vld [vmem:[%s320 + $0x20] sm:$0xff]
        %v382 = vld [vmem:[%s320 + $0x28] sm:$0xff]
        %v383 = vld [vmem:[%s320 + $0x30] sm:$0xff]
        %v384 = vld [vmem:[%s320 + $0x38] sm:$0xff]
        %v385 = vld [vmem:[%s320 + $0x40] sm:$0xff]
        %v386 = vld [vmem:[%s320 + $0x48] sm:$0xff]
        %v387 = vld [vmem:[%s320 + $0x50] sm:$0xff]
        %v388 = vld [vmem:[%s320 + $0x58] sm:$0xff]
        %v389 = vld [vmem:[%s320 + $0x60] sm:$0xff]
        %v390 = vld [vmem:[%s320 + $0x68] sm:$0xff]
        %v391 = vld [vmem:[%s320 + $0x70] sm:$0xff]
        %v392 = vld [vmem:[%s320 + $0x78] sm:$0xff]
        %v393 = vld [vmem:[%s320 + $0x80] sm:$0xff]
        %v394 = vld [vmem:[%s320 + $0x88] sm:$0xff]
        %v395 = vld [vmem:[%s320 + $0x90] sm:$0xff]
        %v396 = vld [vmem:[%s320 + $0x98] sm:$0xff]
        %v397 = vld [vmem:[%s320 + $0xa0] sm:$0xff]
        %v398 = vld [vmem:[%s320 + $0xa8] sm:$0xff]
        %v399 = vld [vmem:[%s320 + $0xb0] sm:$0xff]
        %v400 = vld [vmem:[%s320 + $0xb8] sm:$0xff]
        %v401 = vld [vmem:[%s320 + $0xc0] sm:$0xff]
        %v402 = vld [vmem:[%s320 + $0xc8] sm:$0xff]
        %v403 = vld [vmem:[%s320 + $0xd0] sm:$0xff]
        %v404 = vld [vmem:[%s320 + $0xd8] sm:$0xff]
        %v405 = vld [vmem:[%s320 + $0xe0] sm:$0xff]
        %v406 = vld [vmem:[%s320 + $0xe8] sm:$0xff]
        %v407 = vld [vmem:[%s320 + $0xf0] sm:$0xff]
        %v408 = vld [vmem:[%s320 + $0xf8] sm:$0xff]
        %v409 = vld [vmem:[%s320 + $0x100] sm:$0xff]
        %v410 = vld [vmem:[%s320 + $0x108] sm:$0xff]
        %v411 = vld [vmem:[%s320 + $0x110] sm:$0xff]
        %v412 = vld [vmem:[%s320 + $0x118] sm:$0xff]
        %v413 = vld [vmem:[%s320 + $0x120] sm:$0xff]
        %v414 = vld [vmem:[%s320 + $0x128] sm:$0xff]
        %v415 = vld [vmem:[%s320 + $0x130] sm:$0xff]
        %v416 = vld [vmem:[%s320 + $0x138] sm:$0xff]
        %v417 = vld [vmem:[%s320 + $0x140] sm:$0xff]
        %v418 = vld [vmem:[%s320 + $0x148] sm:$0xff]
        %v419 = vld [vmem:[%s320 + $0x150] sm:$0xff]
        %v420 = vld [vmem:[%s320 + $0x158] sm:$0xff]
        %v421 = vld [vmem:[%s320 + $0x160] sm:$0xff]
        %v422 = vld [vmem:[%s320 + $0x168] sm:$0xff]
        %v423 = vld [vmem:[%s320 + $0x170] sm:$0xff]
        %v424 = vld [vmem:[%s320 + $0x178] sm:$0xff]
        %v425 = vld [vmem:[%s320 + $0x180] sm:$0xff]
        %v426 = vld [vmem:[%s320 + $0x188] sm:$0xff]
        %v427 = vld [vmem:[%s320 + $0x190] sm:$0xff]
        %v428 = vld [vmem:[%s320 + $0x198] sm:$0xff]
        %v429 = vld [vmem:[%s320 + $0x1a0] sm:$0xff]
        %v430 = vld [vmem:[%s320 + $0x1a8] sm:$0xff]
        %v431 = vld [vmem:[%s320 + $0x1b0] sm:$0xff]
        %v432 = vld [vmem:[%s320 + $0x1b8] sm:$0xff]
        %v433 = vld [vmem:[%s320 + $0x1c0] sm:$0xff]
        %v434 = vld [vmem:[%s320 + $0x1c8] sm:$0xff]
        %v435 = vld [vmem:[%s320 + $0x1d0] sm:$0xff]
        %v436 = vld [vmem:[%s320 + $0x1d8] sm:$0xff]
        %v437 = vld [vmem:[%s320 + $0x1e0] sm:$0xff]
        %v438 = vld [vmem:[%s320 + $0x1e8] sm:$0xff]
        %v439 = vld [vmem:[%s320 + $0x1f0] sm:$0xff]
        %v440 = vld [vmem:[%s320 + $0x1f8] sm:$0xff]
        %v441 = vpack.c.bf16 %v381, %v377
        %v442 = vpack.c.bf16 %v382, %v378
        %v443 = vpack.c.bf16 %v383, %v379
        %v444 = vpack.c.bf16 %v384, %v380
        %v445 = vpack.c.bf16 %v389, %v385
        %v446 = vpack.c.bf16 %v390, %v386
        %v447 = vpack.c.bf16 %v391, %v387
        %v448 = vpack.c.bf16 %v392, %v388
        %v449 = vpack.c.bf16 %v397, %v393
        %v450 = vpack.c.bf16 %v398, %v394
        %v451 = vpack.c.bf16 %v399, %v395
        %v452 = vpack.c.bf16 %v400, %v396
        %v453 = vpack.c.bf16 %v405, %v401
        %v454 = vpack.c.bf16 %v406, %v402
        %v455 = vpack.c.bf16 %v407, %v403
        %v456 = vpack.c.bf16 %v408, %v404
        %v457 = vpack.c.bf16 %v413, %v409
        %v458 = vpack.c.bf16 %v414, %v410
        %v459 = vpack.c.bf16 %v415, %v411
        %v460 = vpack.c.bf16 %v416, %v412
        %v461 = vpack.c.bf16 %v421, %v417
        %v462 = vpack.c.bf16 %v422, %v418
        %v463 = vpack.c.bf16 %v423, %v419
        %v464 = vpack.c.bf16 %v424, %v420
        %v465 = vpack.c.bf16 %v429, %v425
        %v466 = vpack.c.bf16 %v430, %v426
        %v467 = vpack.c.bf16 %v431, %v427
        %v468 = vpack.c.bf16 %v432, %v428
        %v469 = vpack.c.bf16 %v437, %v433
        %v470 = vpack.c.bf16 %v438, %v434
        %v471 = vpack.c.bf16 %v439, %v435
        %v472 = vpack.c.bf16 %v440, %v436
        %v473 = vld [vmem:[#allocation2] sm:$0xff]
        %474 = vmatpush.bf16.xpose.msra.mxu0 %v469
        %475 = vmatpush.bf16.xpose.msra.mxu0 %v465
        %476 = vmatpush.bf16.xpose.msra.mxu0 %v461
        %477 = vmatpush.bf16.xpose.msra.mxu0 %v457
        %478 = vmatpush.bf16.xpose.msra.mxu0 %v453
        %479 = vmatpush.bf16.xpose.msra.mxu0 %v449
        %480 = vmatpush.bf16.xpose.msra.mxu0 %v445
        %481 = vmatpush.bf16.xpose.msra.mxu0 %v441
        %482 = vmatmul.bf16.gmra.mxu0 %v373
        %v483 = vpop.f32.mrf.mxu0
        %v484 = vadd.f32 0.0, %v483
        %v485 = vpop.f32.mrf.mxu0
        %486 = vdwg.mxu0
        %487 = vmatpush.bf16.xpose.msra.mxu0 %v470
        %488 = vmatpush.bf16.xpose.msra.mxu0 %v466
        %489 = vmatpush.bf16.xpose.msra.mxu0 %v462
        %490 = vmatpush.bf16.xpose.msra.mxu0 %v458
        %491 = vmatpush.bf16.xpose.msra.mxu0 %v454
        %492 = vmatpush.bf16.xpose.msra.mxu0 %v450
        %493 = vmatpush.bf16.xpose.msra.mxu0 %v446
        %494 = vmatpush.bf16.xpose.msra.mxu0 %v442
        %495 = vmatmul.bf16.gmra.mxu0 %v374
        %v496 = vpop.f32.mrf.mxu0
        %v497 = vadd.f32 %v484, %v496
        %v498 = vpop.f32.mrf.mxu0
        %499 = vdwg.mxu0
        %500 = vmatpush.bf16.xpose.msra.mxu0 %v471
        %501 = vmatpush.bf16.xpose.msra.mxu0 %v467
        %502 = vmatpush.bf16.xpose.msra.mxu0 %v463
        %503 = vmatpush.bf16.xpose.msra.mxu0 %v459
        %504 = vmatpush.bf16.xpose.msra.mxu0 %v455
        %505 = vmatpush.bf16.xpose.msra.mxu0 %v451
        %506 = vmatpush.bf16.xpose.msra.mxu0 %v447
        %507 = vmatpush.bf16.xpose.msra.mxu0 %v443
        %508 = vmatmul.bf16.gmra.mxu0 %v375
        %v509 = vpop.f32.mrf.mxu0
        %v510 = vadd.f32 %v497, %v509
        %v511 = vpop.f32.mrf.mxu0
        %512 = vdwg.mxu0
        %513 = vmatpush.bf16.xpose.msra.mxu0 %v472
        %514 = vmatpush.bf16.xpose.msra.mxu0 %v468
        %515 = vmatpush.bf16.xpose.msra.mxu0 %v464
        %516 = vmatpush.bf16.xpose.msra.mxu0 %v460
        %517 = vmatpush.bf16.xpose.msra.mxu0 %v456
        %518 = vmatpush.bf16.xpose.msra.mxu0 %v452
        %519 = vmatpush.bf16.xpose.msra.mxu0 %v448
        %520 = vmatpush.bf16.xpose.msra.mxu0 %v444
        %521 = vmatmul.bf16.gmra.mxu0 %v376
        %v522 = vpop.f32.mrf.mxu0
        %v523 = vadd.f32 %v510, %v522
        %v524 = vpop.f32.mrf.mxu0
        %525 = vdwg.mxu0
        %v526 = vadd.f32 %v473, %v523
        %527 = vst [vmem:[#allocation2] sm:$0xff] %v526
        %p528 = scmp.eq.s32.totalorder %s19, 1
        // Predicated region
        $region60: #{softmax_classifier_forward.1} parent=50 // pred_check
          %p529 = pneg %p528
        $region61: #{softmax_classifier_forward.1} parent=50 // pred_check_branch
          %531 = sbr.rel (%p529) target = $region63
        $region62: #{softmax_classifier_forward.1} parent=50 // pred_region
          %v532 = vld [vmem:[#allocation2] sm:$0xff]
          %v533 = vld [vmem:[%s2] sm:$0x1]
          %v535 = vperm.slane %v533, 0
          %v537 = vadd.f32 %v532, %v535
          %538 = vst [vmem:[%s363] sm:$0xff] %v537
        $region63: #{softmax_classifier_forward.1} parent=50 // pred_fallthru
          _
        %p539 = scmp.lt.s32.totalorder %s18, 0
        %s540 = scalar_select %p539, %s18, 0
        %s541 = smul.addr %s540, 8
        %s542 = scalar_lea.vmem %s3, %s541
        // Predicated region
        $region64: #{softmax_classifier_forward.1} parent=50 // pred_check
          %p543 = pneg %p119
        $region65: #{softmax_classifier_forward.1} parent=50 // pred_check_branch
          %545 = sbr.rel (%p543) target = $region67
        $region66: #{softmax_classifier_forward.1} parent=50 // pred_region
          _
        $region67: #{softmax_classifier_forward.1} parent=50 // pred_fallthru
          _
        // Predicated region
        $region68: #{softmax_classifier_forward.1} parent=50 // pred_check
          %p546 = pneg %p119
        $region69: #{softmax_classifier_forward.1} parent=50 // pred_check_branch
          %548 = sbr.rel (%p546) target = $region71
        $region70: #{softmax_classifier_forward.1} parent=50 // pred_region
          %p549 = scmp.lt.s32.totalorder %s18, 0
          %s550 = scalar_select %p549, %s18, 0
          %s551 = smul.addr %s550, 8
          %s552 = scalar_lea.vmem %s3, %s551
        $region71: #{softmax_classifier_forward.1} parent=50 // pred_fallthru
          _
      $region51: #{softmax_classifier_forward.1} parent=5 // pred_fallthru
        _
      %p553 = scmp.le.s32.totalorder 2, %s9
      // Predicated region
      $region72: #{softmax_classifier_forward.1} parent=5 // pred_check
        %p554 = pneg %p553
      $region73: #{softmax_classifier_forward.1} parent=5 // pred_check_branch
        %556 = sbr.rel (%p554) target = $region75
      $region74: #{softmax_classifier_forward.1} parent=5 // pred_region
        %s557 = ssub.s32 %s9, 2
      $region75: #{softmax_classifier_forward.1} parent=5 // pred_fallthru
        _
    $region6: #{softmax_classifier_forward.1} parent=1 // loop_footer
      %s13 = sadd.s32 1, %s9
    $region7: #{softmax_classifier_forward.1} parent=1 // loop_footer_branch
      %8 = sbr.rel target = $region3
    $region8: #{softmax_classifier_forward.1} parent=1 // loop_exit
      _

</llo_original>
